<compile_context>
chip_gen: v7x
topology: tpu7x:2x2x1
jax: 0.10.0
libtpu: 0.0.40
codegen_flags: <defaults>
</compile_context>

<pallas_src>
import functools

import jax
import jax.numpy as jnp
from jax.experimental import pallas as pl
from jax.experimental.pallas import tpu as pltpu

_LN_EPS = 1e-5          # torch.nn.LayerNorm default
_MIN_SPLIT_ROWS = 512   # only split for v7x's 2 TCs if each half is >= this


def _round_up(n, m):
    return ((n + m - 1) // m) * m


def _layernorm(h, gamma, beta, inv_n):
    # Two independent cross-lane reductions (sum, sum-of-squares) so the XLU
    # reduces can overlap; biased variance + eps (PyTorch semantics).  The
    # E[x^2]-E[x]^2 form can cancel slightly negative in f32 -> clamp.
    s = jnp.sum(h, axis=-1, keepdims=True)
    ss = jnp.sum(h * h, axis=-1, keepdims=True)
    mean = s * inv_n
    var = jnp.maximum(ss * inv_n - mean * mean, 0.0)
    return (h - mean) * jax.lax.rsqrt(var + _LN_EPS) * gamma + beta


def _critic_kernel(x_ref, a_ref,
                   w1_ref, b1_ref, g1_ref, bt1_ref,
                   w2x_ref, w2a_ref, b2_ref, g2_ref, bt2_ref,
                   wv8_ref, bv_ref,
                   out_ref, *, inv_h):
    x = x_ref[...]
    a = a_ref[...]

    # ---- linear1 -> ln1 -> relu ------------------------------------------
    h = jnp.dot(x, w1_ref[...], preferred_element_type=jnp.float32) + b1_ref[...]
    h = _layernorm(h, g1_ref[...], bt1_ref[...], inv_h)
    h = jnp.maximum(h, 0.0)

    # ---- concat(h, a) @ W2  ==  h @ W2_h + a @ W2_a  -> ln2 -> relu -------
    h2 = (jnp.dot(h, w2x_ref[...], preferred_element_type=jnp.float32)
          + jnp.dot(a, w2a_ref[...], preferred_element_type=jnp.float32)
          + b2_ref[...])
    h2 = _layernorm(h2, g2_ref[...], bt2_ref[...], inv_h)
    h2 = jnp.maximum(h2, 0.0)

    # ---- V head, lane-dense: (8, H) @ (H, tile_b) -> take row 0 -----------
    # wv is replicated across 8 sublanes so the matmul has a well-formed M dim;
    # the result row is lane-dense, giving unmasked vector stores and a dense
    # output DMA (instead of tile_b/8 single-lane masked stores).
    v = jnp.dot(wv8_ref[...], h2.T, preferred_element_type=jnp.float32)
    out_ref[...] = (v[0:1, :] + bv_ref[...]).astype(out_ref.dtype)


@functools.partial(jax.jit, static_argnames=("tile_b",))
def critic_forward(x, actions, params, *, tile_b=8192):
    """x: (B, num_inputs), actions: (B, num_actions)  ->  (B, 1)."""
    B, num_inputs = x.shape
    num_actions = actions.shape[1]
    hidden = params["w1"].shape[1]

    # ---- batch tiling (static shape math) ----------------------------------
    tile_b = max(8, _round_up(min(int(tile_b), B), 8))
    # v7x: prefer >= 2 grid steps so both TensorCores run, but only when the
    # resulting tiles stay large enough to amortize per-step overhead.
    if B >= 2 * _MIN_SPLIT_ROWS:
        tile_b = min(tile_b, _round_up(pl.cdiv(B, 2), 8))
    num_tiles = pl.cdiv(B, tile_b)
    if num_tiles > 1 and tile_b % 128 != 0:
        # The lane-dense (1, tile_b) output block must be 128-aligned unless it
        # spans the full output width.
        tile_b = _round_up(tile_b, 128)
        num_tiles = pl.cdiv(B, tile_b)
    b_out = num_tiles * tile_b      # output slab width (tiny; sliced below)

    def row_spec(f):
        # Per-grid-step tile along the batch axis; last dim = full feature dim.
        # The final block may be partial -- Pallas masks it; rows are
        # independent so padded garbage rows cannot affect valid rows.
        return pl.BlockSpec((tile_b, f), lambda i: (i, 0))

    def const_spec(p):
        # Full array, constant block index -> stays VMEM-resident across steps.
        return pl.BlockSpec(p.shape, lambda i: (0, 0))

    # V-head weights replicated to 8 sublanes for the in-kernel MXU row-matmul.
    wv8 = jnp.broadcast_to(params["wv"], (8, hidden))

    weights = (
        params["w1"], params["b1"], params["g1"], params["bt1"],
        params["w2x"], params["w2a"], params["b2"], params["g2"], params["bt2"],
        wv8, params["bv"],
    )

    grid_spec = pltpu.PrefetchScalarGridSpec(
        num_scalar_prefetch=0,
        grid=(num_tiles,),
        in_specs=[row_spec(num_inputs), row_spec(num_actions)]
                 + [const_spec(p) for p in weights],
        out_specs=pl.BlockSpec((1, tile_b), lambda i: (0, i)),
    )

    # Advisory cost estimate so XLA schedules the call sensibly.
    param_bytes = int(sum(p.size for p in weights)) * 4
    flops = int(2 * B * (num_inputs * hidden + hidden * hidden
                         + num_actions * hidden + hidden)
                + 12 * B * hidden)
    cost = pl.CostEstimate(
        flops=flops,
        transcendentals=int(2 * B),  # one rsqrt per row per LayerNorm
        bytes_accessed=int(4 * B * (num_inputs + num_actions + 1)) + param_bytes,
    )

    kernel = functools.partial(_critic_kernel, inv_h=1.0 / float(hidden))

    out = pl.pallas_call(
        kernel,
        out_shape=jax.ShapeDtypeStruct((1, b_out), jnp.float32),
        grid_spec=grid_spec,
        compiler_params=pltpu.CompilerParams(
            # Batch tiles are independent -> shard across v7x's 2 TensorCores.
            dimension_semantics=("parallel",),
            # Explicit scoped-VMEM budget; the working set is only a few MB
            # even at tile_b=8192, so this is pure headroom on all generations.
            vmem_limit_bytes=32 * 1024 * 1024,
        ),
        cost_estimate=cost,
    )(x, actions, *weights)

    # (1, b_out) row -> (B, 1) column; only B*4 bytes, negligible.
    return out[0, :B].reshape(B, 1)


def init_critic_params(key, num_inputs, hidden_size, num_actions):
    """Deterministic parameter init mirroring nn.Linear / nn.LayerNorm shapes."""
    ks = jax.random.split(key, 6)

    def linear(kw, kb, fan_in, fan_out):
        bound = 1.0 / jnp.sqrt(jnp.float32(fan_in))
        w = jax.random.uniform(kw, (fan_in, fan_out), jnp.float32, -bound, bound)
        b = jax.random.uniform(kb, (1, fan_out), jnp.float32, -bound, bound)
        return w, b

    w1, b1 = linear(ks[0], ks[1], num_inputs, hidden_size)
    w2, b2 = linear(ks[2], ks[3], hidden_size + num_actions, hidden_size)
    wv, bv = linear(ks[4], ks[5], hidden_size, 1)
    # Critic.__init__ scales the V head by 0.1
    wv = wv * 0.1
    bv = bv * 0.1

    return {
        "w1": w1, "b1": b1,
        "g1": jnp.ones((1, hidden_size), jnp.float32),
        "bt1": jnp.zeros((1, hidden_size), jnp.float32),
        # split W2 into the part acting on hidden state and the part on actions
        "w2x": w2[:hidden_size, :], "w2a": w2[hidden_size:, :], "b2": b2,
        "g2": jnp.ones((1, hidden_size), jnp.float32),
        "bt2": jnp.zeros((1, hidden_size), jnp.float32),
        # V head stored as a (1, hidden) row.
        "wv": wv.T, "bv": bv,
    }


def _reference_forward(x, actions, p):
    # Pure-JAX reference with PyTorch LayerNorm semantics.
    def ln(h, g, b):
        mean = jnp.mean(h, axis=-1, keepdims=True)
        var = jnp.mean((h - mean) ** 2, axis=-1, keepdims=True)
        return (h - mean) * jax.lax.rsqrt(var + _LN_EPS) * g + b

    h = jnp.maximum(ln(x @ p["w1"] + p["b1"], p["g1"], p["bt1"]), 0.0)
    h2 = jnp.maximum(ln(h @ p["w2x"] + actions @ p["w2a"] + p["b2"],
                        p["g2"], p["bt2"]), 0.0)
    return h2 @ p["wv"].T + p["bv"]


if __name__ == "__main__":
    NUM_INPUTS, HIDDEN, NUM_ACTIONS = 16, 32, 4

    key = jax.random.PRNGKey(0)
    k_x, k_a, k_p = jax.random.split(key, 3)
    params = init_critic_params(k_p, NUM_INPUTS, HIDDEN, NUM_ACTIONS)

    # 1) Small single-tile run (B=8).
    B = 8
    x = jax.random.normal(k_x, (B, NUM_INPUTS), jnp.float32)
    actions = jax.random.normal(k_a, (B, NUM_ACTIONS), jnp.float32)
    v = critic_forward(x, actions, params)
    jax.block_until_ready(v)
    v_ref = _reference_forward(x, actions, params)
    assert v.shape == (B, 1)
    assert jnp.allclose(v, v_ref, atol=1e-4, rtol=1e-4)

    # 2) Batch not a multiple of 8, single tile (padded/masked tail rows).
    B2 = 50
    x2 = jax.random.normal(jax.random.PRNGKey(1), (B2, NUM_INPUTS), jnp.float32)
    a2 = jax.random.normal(jax.random.PRNGKey(2), (B2, NUM_ACTIONS), jnp.float32)
    v2 = critic_forward(x2, a2, params)
    jax.block_until_ready(v2)
    v2_ref = _reference_forward(x2, a2, params)
    assert v2.shape == (B2, 1)
    assert jnp.allclose(v2, v2_ref, atol=1e-4, rtol=1e-4)

    # 3) Multi-tile grid with a partial last block (B=300, tile_b=128 -> 3 tiles).
    B3 = 300
    x3 = jax.random.normal(jax.random.PRNGKey(3), (B3, NUM_INPUTS), jnp.float32)
    a3 = jax.random.normal(jax.random.PRNGKey(4), (B3, NUM_ACTIONS), jnp.float32)
    v3 = critic_forward(x3, a3, params, tile_b=128)
    jax.block_until_ready(v3)
    v3_ref = _reference_forward(x3, a3, params)
    assert v3.shape == (B3, 1)
    assert jnp.allclose(v3, v3_ref, atol=1e-4, rtol=1e-4)

    # 4) v7x-split heuristic path: B=1536 -> two 768-row tiles (also fine on
    #    single-TC chips).
    B4 = 1536
    x4 = jax.random.normal(jax.random.PRNGKey(5), (B4, NUM_INPUTS), jnp.float32)
    a4 = jax.random.normal(jax.random.PRNGKey(6), (B4, NUM_ACTIONS), jnp.float32)
    v4 = critic_forward(x4, a4, params)
    jax.block_until_ready(v4)
    v4_ref = _reference_forward(x4, a4, params)
    assert v4.shape == (B4, 1)
    assert jnp.allclose(v4, v4_ref, atol=1e-4, rtol=1e-4)

    print("KERNEL_OK")
</pallas_src>

<mosaic_0001>
module attributes {stable_mosaic.version = 11 : i64} {
  func.func @_critic_kernel(%arg0: i32, %arg1: memref<8x16xf32, #tpu.memory_space<vmem>>, %arg2: memref<8x4xf32, #tpu.memory_space<vmem>>, %arg3: memref<16x32xf32, #tpu.memory_space<vmem>>, %arg4: memref<1x32xf32, #tpu.memory_space<vmem>>, %arg5: memref<1x32xf32, #tpu.memory_space<vmem>>, %arg6: memref<1x32xf32, #tpu.memory_space<vmem>>, %arg7: memref<32x32xf32, #tpu.memory_space<vmem>>, %arg8: memref<4x32xf32, #tpu.memory_space<vmem>>, %arg9: memref<1x32xf32, #tpu.memory_space<vmem>>, %arg10: memref<1x32xf32, #tpu.memory_space<vmem>>, %arg11: memref<1x32xf32, #tpu.memory_space<vmem>>, %arg12: memref<8x32xf32, #tpu.memory_space<vmem>>, %arg13: memref<1x1xf32, #tpu.memory_space<vmem>>, %arg14: memref<1x8xf32, #tpu.memory_space<vmem>>) attributes {dimension_semantics = [#tpu.dimension_semantics<parallel>], iteration_bounds = array<i64: 1>, scalar_prefetch = 0 : i64, scratch_operands = 0 : i64, tpu.core_type = #tpu.core_type<tc>, window_params = [{transform_indices = @transform_0, window_bounds = array<i64: 8, 16>}, {transform_indices = @transform_1, window_bounds = array<i64: 8, 4>}, {pipeline_mode = #tpu.pipeline_mode<synchronous>, transform_indices = @transform_2, window_bounds = array<i64: 16, 32>}, {pipeline_mode = #tpu.pipeline_mode<synchronous>, transform_indices = @transform_3, window_bounds = array<i64: 1, 32>}, {pipeline_mode = #tpu.pipeline_mode<synchronous>, transform_indices = @transform_4, window_bounds = array<i64: 1, 32>}, {pipeline_mode = #tpu.pipeline_mode<synchronous>, transform_indices = @transform_5, window_bounds = array<i64: 1, 32>}, {pipeline_mode = #tpu.pipeline_mode<synchronous>, transform_indices = @transform_6, window_bounds = array<i64: 32, 32>}, {pipeline_mode = #tpu.pipeline_mode<synchronous>, transform_indices = @transform_7, window_bounds = array<i64: 4, 32>}, {pipeline_mode = #tpu.pipeline_mode<synchronous>, transform_indices = @transform_8, window_bounds = array<i64: 1, 32>}, {pipeline_mode = #tpu.pipeline_mode<synchronous>, transform_indices = @transform_9, window_bounds = array<i64: 1, 32>}, {pipeline_mode = #tpu.pipeline_mode<synchronous>, transform_indices = @transform_10, window_bounds = array<i64: 1, 32>}, {pipeline_mode = #tpu.pipeline_mode<synchronous>, transform_indices = @transform_11, window_bounds = array<i64: 8, 32>}, {pipeline_mode = #tpu.pipeline_mode<synchronous>, transform_indices = @transform_12, window_bounds = array<i64: 1, 1>}, {transform_indices = @transform_13, window_bounds = array<i64: 1, 8>}]} {
    %c0 = arith.constant 0 : index
    %c0_0 = arith.constant 0 : index
    %0 = vector.load %arg1[%c0, %c0_0] : memref<8x16xf32, #tpu.memory_space<vmem>>, vector<8x16xf32>
    %c0_1 = arith.constant 0 : index
    %c0_2 = arith.constant 0 : index
    %1 = vector.load %arg2[%c0_1, %c0_2] : memref<8x4xf32, #tpu.memory_space<vmem>>, vector<8x4xf32>
    %c0_3 = arith.constant 0 : index
    %c0_4 = arith.constant 0 : index
    %2 = vector.load %arg3[%c0_3, %c0_4] : memref<16x32xf32, #tpu.memory_space<vmem>>, vector<16x32xf32>
    %cst = arith.constant dense<0.000000e+00> : vector<8x32xf32>
    %3 = tpu.matmul %0, %2, %cst {dimension_numbers = #tpu.dot_dimension_numbers<[1], [0], [0], [1], [0, 0, 1, 1], [], []>} : vector<8x16xf32>, vector<16x32xf32>, vector<8x32xf32> -> vector<8x32xf32>
    %c0_5 = arith.constant 0 : index
    %c0_6 = arith.constant 0 : index
    %4 = vector.load %arg4[%c0_5, %c0_6] : memref<1x32xf32, #tpu.memory_space<vmem>>, vector<1x32xf32>
    %5 = vector.broadcast %4 : vector<1x32xf32> to vector<8x32xf32>
    %6 = arith.addf %3, %5 : vector<8x32xf32>
    %c0_7 = arith.constant 0 : index
    %c0_8 = arith.constant 0 : index
    %7 = vector.load %arg5[%c0_7, %c0_8] : memref<1x32xf32, #tpu.memory_space<vmem>>, vector<1x32xf32>
    %c0_9 = arith.constant 0 : index
    %c0_10 = arith.constant 0 : index
    %8 = vector.load %arg6[%c0_9, %c0_10] : memref<1x32xf32, #tpu.memory_space<vmem>>, vector<1x32xf32>
    %cst_11 = arith.constant dense<0.000000e+00> : vector<8xf32>
    %9 = vector.multi_reduction <add>, %6, %cst_11 [1] : vector<8x32xf32> to vector<8xf32>
    %10 = vector.shape_cast %9 : vector<8xf32> to vector<8x1xf32>
    %11 = arith.mulf %6, %6 : vector<8x32xf32>
    %cst_12 = arith.constant dense<0.000000e+00> : vector<8xf32>
    %12 = vector.multi_reduction <add>, %11, %cst_12 [1] : vector<8x32xf32> to vector<8xf32>
    %13 = vector.shape_cast %12 : vector<8xf32> to vector<8x1xf32>
    %cst_13 = arith.constant 3.125000e-02 : f32
    %14 = vector.broadcast %cst_13 : f32 to vector<8x1xf32>
    %15 = arith.mulf %10, %14 : vector<8x1xf32>
    %cst_14 = arith.constant 3.125000e-02 : f32
    %16 = vector.broadcast %cst_14 : f32 to vector<8x1xf32>
    %17 = arith.mulf %13, %16 : vector<8x1xf32>
    %18 = arith.mulf %15, %15 : vector<8x1xf32>
    %19 = arith.subf %17, %18 : vector<8x1xf32>
    %cst_15 = arith.constant 0.000000e+00 : f32
    %20 = vector.broadcast %cst_15 : f32 to vector<8x1xf32>
    %21 = arith.maximumf %19, %20 : vector<8x1xf32>
    %22 = vector.broadcast %15 : vector<8x1xf32> to vector<8x32xf32>
    %23 = arith.subf %6, %22 : vector<8x32xf32>
    %cst_16 = arith.constant 9.99999974E-6 : f32
    %24 = vector.broadcast %cst_16 : f32 to vector<8x1xf32>
    %25 = arith.addf %21, %24 : vector<8x1xf32>
    %26 = math.rsqrt %25 : vector<8x1xf32>
    %27 = vector.broadcast %26 : vector<8x1xf32> to vector<8x32xf32>
    %28 = arith.mulf %23, %27 : vector<8x32xf32>
    %29 = vector.broadcast %7 : vector<1x32xf32> to vector<8x32xf32>
    %30 = arith.mulf %28, %29 : vector<8x32xf32>
    %31 = vector.broadcast %8 : vector<1x32xf32> to vector<8x32xf32>
    %32 = arith.addf %30, %31 : vector<8x32xf32>
    %cst_17 = arith.constant 0.000000e+00 : f32
    %33 = vector.broadcast %cst_17 : f32 to vector<8x32xf32>
    %34 = arith.maximumf %32, %33 : vector<8x32xf32>
    %c0_18 = arith.constant 0 : index
    %c0_19 = arith.constant 0 : index
    %35 = vector.load %arg7[%c0_18, %c0_19] : memref<32x32xf32, #tpu.memory_space<vmem>>, vector<32x32xf32>
    %cst_20 = arith.constant dense<0.000000e+00> : vector<8x32xf32>
    %36 = tpu.matmul %34, %35, %cst_20 {dimension_numbers = #tpu.dot_dimension_numbers<[1], [0], [0], [1], [0, 0, 1, 1], [], []>} : vector<8x32xf32>, vector<32x32xf32>, vector<8x32xf32> -> vector<8x32xf32>
    %c0_21 = arith.constant 0 : index
    %c0_22 = arith.constant 0 : index
    %37 = vector.load %arg8[%c0_21, %c0_22] : memref<4x32xf32, #tpu.memory_space<vmem>>, vector<4x32xf32>
    %cst_23 = arith.constant dense<0.000000e+00> : vector<8x32xf32>
    %38 = tpu.matmul %1, %37, %cst_23 {dimension_numbers = #tpu.dot_dimension_numbers<[1], [0], [0], [1], [0, 0, 1, 1], [], []>} : vector<8x4xf32>, vector<4x32xf32>, vector<8x32xf32> -> vector<8x32xf32>
    %39 = arith.addf %36, %38 : vector<8x32xf32>
    %c0_24 = arith.constant 0 : index
    %c0_25 = arith.constant 0 : index
    %40 = vector.load %arg9[%c0_24, %c0_25] : memref<1x32xf32, #tpu.memory_space<vmem>>, vector<1x32xf32>
    %41 = vector.broadcast %40 : vector<1x32xf32> to vector<8x32xf32>
    %42 = arith.addf %39, %41 : vector<8x32xf32>
    %c0_26 = arith.constant 0 : index
    %c0_27 = arith.constant 0 : index
    %43 = vector.load %arg10[%c0_26, %c0_27] : memref<1x32xf32, #tpu.memory_space<vmem>>, vector<1x32xf32>
    %c0_28 = arith.constant 0 : index
    %c0_29 = arith.constant 0 : index
    %44 = vector.load %arg11[%c0_28, %c0_29] : memref<1x32xf32, #tpu.memory_space<vmem>>, vector<1x32xf32>
    %cst_30 = arith.constant dense<0.000000e+00> : vector<8xf32>
    %45 = vector.multi_reduction <add>, %42, %cst_30 [1] : vector<8x32xf32> to vector<8xf32>
    %46 = vector.shape_cast %45 : vector<8xf32> to vector<8x1xf32>
    %47 = arith.mulf %42, %42 : vector<8x32xf32>
    %cst_31 = arith.constant dense<0.000000e+00> : vector<8xf32>
    %48 = vector.multi_reduction <add>, %47, %cst_31 [1] : vector<8x32xf32> to vector<8xf32>
    %49 = vector.shape_cast %48 : vector<8xf32> to vector<8x1xf32>
    %cst_32 = arith.constant 3.125000e-02 : f32
    %50 = vector.broadcast %cst_32 : f32 to vector<8x1xf32>
    %51 = arith.mulf %46, %50 : vector<8x1xf32>
    %cst_33 = arith.constant 3.125000e-02 : f32
    %52 = vector.broadcast %cst_33 : f32 to vector<8x1xf32>
    %53 = arith.mulf %49, %52 : vector<8x1xf32>
    %54 = arith.mulf %51, %51 : vector<8x1xf32>
    %55 = arith.subf %53, %54 : vector<8x1xf32>
    %cst_34 = arith.constant 0.000000e+00 : f32
    %56 = vector.broadcast %cst_34 : f32 to vector<8x1xf32>
    %57 = arith.maximumf %55, %56 : vector<8x1xf32>
    %58 = vector.broadcast %51 : vector<8x1xf32> to vector<8x32xf32>
    %59 = arith.subf %42, %58 : vector<8x32xf32>
    %cst_35 = arith.constant 9.99999974E-6 : f32
    %60 = vector.broadcast %cst_35 : f32 to vector<8x1xf32>
    %61 = arith.addf %57, %60 : vector<8x1xf32>
    %62 = math.rsqrt %61 : vector<8x1xf32>
    %63 = vector.broadcast %62 : vector<8x1xf32> to vector<8x32xf32>
    %64 = arith.mulf %59, %63 : vector<8x32xf32>
    %65 = vector.broadcast %43 : vector<1x32xf32> to vector<8x32xf32>
    %66 = arith.mulf %64, %65 : vector<8x32xf32>
    %67 = vector.broadcast %44 : vector<1x32xf32> to vector<8x32xf32>
    %68 = arith.addf %66, %67 : vector<8x32xf32>
    %cst_36 = arith.constant 0.000000e+00 : f32
    %69 = vector.broadcast %cst_36 : f32 to vector<8x32xf32>
    %70 = arith.maximumf %68, %69 : vector<8x32xf32>
    %c0_37 = arith.constant 0 : index
    %c0_38 = arith.constant 0 : index
    %71 = vector.load %arg12[%c0_37, %c0_38] : memref<8x32xf32, #tpu.memory_space<vmem>>, vector<8x32xf32>
    %72 = tpu.transpose %70, [1, 0] : vector<8x32xf32> -> vector<32x8xf32>
    %cst_39 = arith.constant dense<0.000000e+00> : vector<8x8xf32>
    %73 = tpu.matmul %71, %72, %cst_39 {dimension_numbers = #tpu.dot_dimension_numbers<[1], [0], [0], [1], [0, 0, 1, 1], [], []>} : vector<8x32xf32>, vector<32x8xf32>, vector<8x8xf32> -> vector<8x8xf32>
    %74 = vector.extract_strided_slice %73 {offsets = [0, 0], sizes = [1, 8], strides = [1, 1]} : vector<8x8xf32> to vector<1x8xf32>
    %c0_40 = arith.constant 0 : index
    %c0_41 = arith.constant 0 : index
    %75 = vector.load %arg13[%c0_40, %c0_41] : memref<1x1xf32, #tpu.memory_space<vmem>>, vector<1x1xf32>
    %76 = vector.broadcast %75 : vector<1x1xf32> to vector<1x8xf32>
    %77 = arith.addf %74, %76 : vector<1x8xf32>
    %c0_42 = arith.constant 0 : index
    %c0_43 = arith.constant 0 : index
    %78 = vector.load %arg14[%c0_42, %c0_43] : memref<1x8xf32, #tpu.memory_space<vmem>>, vector<1x8xf32>
    tpu.vector_store %arg14[%c0_42, %c0_43], %77 {strides = array<i32>} : memref<1x8xf32, #tpu.memory_space<vmem>>, vector<1x8xf32>,
    return
  }
  func.func @transform_0(%arg0: i32) -> (i32, i32) {
    %c0_i32 = arith.constant 0 : i32
    %c0_i32_0 = arith.constant 0 : i32
    return %arg0, %c0_i32 : i32, i32
  }
  func.func @transform_1(%arg0: i32) -> (i32, i32) {
    %c0_i32 = arith.constant 0 : i32
    %c0_i32_0 = arith.constant 0 : i32
    return %arg0, %c0_i32 : i32, i32
  }
  func.func @transform_2(%arg0: i32) -> (i32, i32) {
    %c0_i32 = arith.constant 0 : i32
    %c0_i32_0 = arith.constant 0 : i32
    %c0_i32_1 = arith.constant 0 : i32
    return %c0_i32, %c0_i32_0 : i32, i32
  }
  func.func @transform_3(%arg0: i32) -> (i32, i32) {
    %c0_i32 = arith.constant 0 : i32
    %c0_i32_0 = arith.constant 0 : i32
    %c0_i32_1 = arith.constant 0 : i32
    return %c0_i32, %c0_i32_0 : i32, i32
  }
  func.func @transform_4(%arg0: i32) -> (i32, i32) {
    %c0_i32 = arith.constant 0 : i32
    %c0_i32_0 = arith.constant 0 : i32
    %c0_i32_1 = arith.constant 0 : i32
    return %c0_i32, %c0_i32_0 : i32, i32
  }
  func.func @transform_5(%arg0: i32) -> (i32, i32) {
    %c0_i32 = arith.constant 0 : i32
    %c0_i32_0 = arith.constant 0 : i32
    %c0_i32_1 = arith.constant 0 : i32
    return %c0_i32, %c0_i32_0 : i32, i32
  }
  func.func @transform_6(%arg0: i32) -> (i32, i32) {
    %c0_i32 = arith.constant 0 : i32
    %c0_i32_0 = arith.constant 0 : i32
    %c0_i32_1 = arith.constant 0 : i32
    return %c0_i32, %c0_i32_0 : i32, i32
  }
  func.func @transform_7(%arg0: i32) -> (i32, i32) {
    %c0_i32 = arith.constant 0 : i32
    %c0_i32_0 = arith.constant 0 : i32
    %c0_i32_1 = arith.constant 0 : i32
    return %c0_i32, %c0_i32_0 : i32, i32
  }
  func.func @transform_8(%arg0: i32) -> (i32, i32) {
    %c0_i32 = arith.constant 0 : i32
    %c0_i32_0 = arith.constant 0 : i32
    %c0_i32_1 = arith.constant 0 : i32
    return %c0_i32, %c0_i32_0 : i32, i32
  }
  func.func @transform_9(%arg0: i32) -> (i32, i32) {
    %c0_i32 = arith.constant 0 : i32
    %c0_i32_0 = arith.constant 0 : i32
    %c0_i32_1 = arith.constant 0 : i32
    return %c0_i32, %c0_i32_0 : i32, i32
  }
  func.func @transform_10(%arg0: i32) -> (i32, i32) {
    %c0_i32 = arith.constant 0 : i32
    %c0_i32_0 = arith.constant 0 : i32
    %c0_i32_1 = arith.constant 0 : i32
    return %c0_i32, %c0_i32_0 : i32, i32
  }
  func.func @transform_11(%arg0: i32) -> (i32, i32) {
    %c0_i32 = arith.constant 0 : i32
    %c0_i32_0 = arith.constant 0 : i32
    %c0_i32_1 = arith.constant 0 : i32
    return %c0_i32, %c0_i32_0 : i32, i32
  }
  func.func @transform_12(%arg0: i32) -> (i32, i32) {
    %c0_i32 = arith.constant 0 : i32
    %c0_i32_0 = arith.constant 0 : i32
    %c0_i32_1 = arith.constant 0 : i32
    return %c0_i32, %c0_i32_0 : i32, i32
  }
  func.func @transform_13(%arg0: i32) -> (i32, i32) {
    %c0_i32 = arith.constant 0 : i32
    %c0_i32_0 = arith.constant 0 : i32
    return %c0_i32, %arg0 : i32, i32
  }
}

</mosaic_0001>

<llo_original>
// kernel: critic_forward.1
$region0: #{critic_forward.1}
  #allocation0 [shape = 'u32[]', space=smem, size = 0x4, offset = 0x4, fixed_abs, tag = 'smem constant byte address 0x4 - core index']
  #allocation1 [shape = 'u32[144,128]{1,0:T(1,128)}', space=vmem, size = 0x12000, scoped, tag = 'internal scratch']
  #allocation2 [shape = 'f32[1,1]{1,0:T(1,128)S(1)}', space=vmem, size = 0x200, scoped, tag = 'scoped memory for critic_forward.1']
  %s0 = inlined_call_operand.vmem [shape: f32[8,16], index: 0, kind: input, shape index: {}]
  %s1 = inlined_call_operand.vmem [shape: f32[8,4], index: 1, kind: input, shape index: {}]
  %s2 = inlined_call_operand.vmem [shape: f32[16,32], index: 2, kind: input, shape index: {}]
  %s3 = inlined_call_operand.vmem [shape: f32[1,32], index: 3, kind: input, shape index: {}]
  %s4 = inlined_call_operand.vmem [shape: f32[1,32], index: 4, kind: input, shape index: {}]
  %s5 = inlined_call_operand.hbm [shape: f32[1,32], index: 5, kind: input, shape index: {}]
  %s6 = inlined_call_operand.vmem [shape: f32[32,32], index: 6, kind: input, shape index: {}]
  %s7 = inlined_call_operand.vmem [shape: f32[4,32], index: 7, kind: input, shape index: {}]
  %s8 = inlined_call_operand.hbm [shape: f32[1,32], index: 8, kind: input, shape index: {}]
  %s9 = inlined_call_operand.hbm [shape: f32[1,32], index: 9, kind: input, shape index: {}]
  %s10 = inlined_call_operand.hbm [shape: f32[1,32], index: 10, kind: input, shape index: {}]
  %s11 = inlined_call_operand.vmem [shape: f32[8,32], index: 11, kind: input, shape index: {}]
  %s12 = inlined_call_operand.<no memory space> [shape: f32[1,1], index: 12, kind: input, shape index: {}]
  %s13 = inlined_call_operand.hbm [shape: f32[1,8], index: 13, kind: output, shape index: {}]
  %s14 = sld [smem:[#allocation0]]
  $region78: #{critic_forward.1} parent=0
    _
  %s16 = ssub.s32 1, %s14
  %s17 = scalar_select 0, %s16, %s14
  %v18 = vstv %s12
  %19 = vst [vmem:[#allocation2] sm:$0x1] %v18
  $region1: #{critic_forward.1} parent=0
    #allocation3 [shape = 'u8[512]{0}', space=vmem, size = 0x400, scoped, tag = 'input window, operand 5, single buffered']
    #allocation4 [shape = 's32[1]{0}', space=sflag, size = 0x4, scoped, tag = 'scoped memory for critic_forward.1']
    #allocation5 [shape = 's32[1]{0}', space=sflag, size = 0x4, scoped, tag = 'scoped memory for critic_forward.1']
    #allocation6 [shape = 'u8[512]{0}', space=vmem, size = 0x400, scoped, tag = 'input window, operand 8, single buffered']
    #allocation7 [shape = 's32[1]{0}', space=sflag, size = 0x4, scoped, tag = 'scoped memory for critic_forward.1']
    #allocation8 [shape = 'u8[512]{0}', space=vmem, size = 0x400, scoped, tag = 'input window, operand 9, single buffered']
    #allocation9 [shape = 'u8[512]{0}', space=vmem, size = 0x400, scoped, tag = 'input window, operand 10, single buffered']
    #allocation10 [shape = 's32[1]{0}', space=sflag, size = 0x4, scoped, tag = 'scoped memory for critic_forward.1']
    #allocation11 [shape = 'u8[512]{0}', space=vmem, size = 0x400, scoped, tag = 'output window, operand 0, single buffered']
    %20 = vsyncpa [#allocation4], 0
    %21 = vsyncpa [#allocation7], 0
    %22 = vsyncpa [#allocation10], 0
    %23 = vsyncpa [#allocation5], 0
    // Predicated region
    $region2: #{critic_forward.1} parent=1 // pred_check
      _
    $region3: #{critic_forward.1} parent=1 // pred_check_branch
      %25 = sbr.rel (0) target = $region5
    $region4: #{critic_forward.1} parent=1 // pred_region
      _
    $region5: #{critic_forward.1} parent=1 // pred_fallthru
      _
    // Predicated region
    $region6: #{critic_forward.1} parent=1 // pred_check
      _
    $region7: #{critic_forward.1} parent=1 // pred_check_branch
      %27 = sbr.rel (0) target = $region9
    $region8: #{critic_forward.1} parent=1 // pred_region
      _
    $region9: #{critic_forward.1} parent=1 // pred_fallthru
      _
    // Predicated region
    $region10: #{critic_forward.1} parent=1 // pred_check
      _
    $region11: #{critic_forward.1} parent=1 // pred_check_branch
      %29 = sbr.rel (0) target = $region13
    $region12: #{critic_forward.1} parent=1 // pred_region
      _
    $region13: #{critic_forward.1} parent=1 // pred_fallthru
      _
    // Predicated region
    $region14: #{critic_forward.1} parent=1 // pred_check
      _
    $region15: #{critic_forward.1} parent=1 // pred_check_branch
      %31 = sbr.rel (0) target = $region17
    $region16: #{critic_forward.1} parent=1 // pred_region
      _
    $region17: #{critic_forward.1} parent=1 // pred_fallthru
      _
    // Predicated region
    $region18: #{critic_forward.1} parent=1 // pred_check
      _
    $region19: #{critic_forward.1} parent=1 // pred_check_branch
      %33 = sbr.rel (0) target = $region21
    $region20: #{critic_forward.1} parent=1 // pred_region
      _
    $region21: #{critic_forward.1} parent=1 // pred_fallthru
      _
    // Predicated region
    $region22: #{critic_forward.1} parent=1 // pred_check
      _
    $region23: #{critic_forward.1} parent=1 // pred_check_branch
      %35 = sbr.rel (0) target = $region25
    $region24: #{critic_forward.1} parent=1 // pred_region
      %s37 = ssub.s32 16, 16
      %38 = vsyncadd [#allocation4], %s37
      %s40 = sshll.u32 [#allocation3], 4
      %s41 = int_to_ptr.vmem [resolvable:$true] %s40
      %43 = dma.hbm_to_vmem [thread:$0]  %s5, 16, %s41, [#allocation4]
    $region25: #{critic_forward.1} parent=1 // pred_fallthru
      _
    // Predicated region
    $region26: #{critic_forward.1} parent=1 // pred_check
      _
    $region27: #{critic_forward.1} parent=1 // pred_check_branch
      %45 = sbr.rel (0) target = $region29
    $region28: #{critic_forward.1} parent=1 // pred_region
      _
    $region29: #{critic_forward.1} parent=1 // pred_fallthru
      _
    // Predicated region
    $region30: #{critic_forward.1} parent=1 // pred_check
      _
    $region31: #{critic_forward.1} parent=1 // pred_check_branch
      %47 = sbr.rel (0) target = $region33
    $region32: #{critic_forward.1} parent=1 // pred_region
      _
    $region33: #{critic_forward.1} parent=1 // pred_fallthru
      _
    // Predicated region
    $region34: #{critic_forward.1} parent=1 // pred_check
      _
    $region35: #{critic_forward.1} parent=1 // pred_check_branch
      %49 = sbr.rel (0) target = $region37
    $region36: #{critic_forward.1} parent=1 // pred_region
      %s51 = ssub.s32 16, 16
      %52 = vsyncadd [#allocation7], %s51
      %s54 = sshll.u32 [#allocation6], 4
      %s55 = int_to_ptr.vmem [resolvable:$true] %s54
      %57 = dma.hbm_to_vmem [thread:$0]  %s8, 16, %s55, [#allocation7]
    $region37: #{critic_forward.1} parent=1 // pred_fallthru
      _
    // Predicated region
    $region38: #{critic_forward.1} parent=1 // pred_check
      _
    $region39: #{critic_forward.1} parent=1 // pred_check_branch
      %59 = sbr.rel (0) target = $region41
    $region40: #{critic_forward.1} parent=1 // pred_region
      %s61 = ssub.s32 16, 16
      %62 = vsyncadd [#allocation7], %s61
      %s64 = sshll.u32 [#allocation8], 4
      %s65 = int_to_ptr.vmem [resolvable:$true] %s64
      %67 = dma.hbm_to_vmem [thread:$0]  %s9, 16, %s65, [#allocation7]
    $region41: #{critic_forward.1} parent=1 // pred_fallthru
      _
    // Predicated region
    $region42: #{critic_forward.1} parent=1 // pred_check
      _
    $region43: #{critic_forward.1} parent=1 // pred_check_branch
      %69 = sbr.rel (0) target = $region45
    $region44: #{critic_forward.1} parent=1 // pred_region
      %s71 = ssub.s32 16, 16
      %72 = vsyncadd [#allocation10], %s71
      %s74 = sshll.u32 [#allocation9], 4
      %s75 = int_to_ptr.vmem [resolvable:$true] %s74
      %77 = dma.hbm_to_vmem [thread:$0]  %s10, 16, %s75, [#allocation10]
    $region45: #{critic_forward.1} parent=1 // pred_fallthru
      _
    // Predicated region
    $region46: #{critic_forward.1} parent=1 // pred_check
      _
    $region47: #{critic_forward.1} parent=1 // pred_check_branch
      %79 = sbr.rel (0) target = $region49
    $region48: #{critic_forward.1} parent=1 // pred_region
      _
    $region49: #{critic_forward.1} parent=1 // pred_fallthru
      _
    // Predicated region
    $region50: #{critic_forward.1} parent=1 // pred_check
      _
    $region51: #{critic_forward.1} parent=1 // pred_check_branch
      %81 = sbr.rel (0) target = $region53
    $region52: #{critic_forward.1} parent=1 // pred_region
      _
    $region53: #{critic_forward.1} parent=1 // pred_fallthru
      _
    // Predicated region
    $region54: #{critic_forward.1} parent=1 // pred_check
      _
    $region55: #{critic_forward.1} parent=1 // pred_check_branch
      %83 = sbr.rel (0) target = $region57
    $region56: #{critic_forward.1} parent=1 // pred_region
      %84 = dma.done [#allocation4], 16
    $region57: #{critic_forward.1} parent=1 // pred_fallthru
      _
    // Predicated region
    $region58: #{critic_forward.1} parent=1 // pred_check
      _
    $region59: #{critic_forward.1} parent=1 // pred_check_branch
      %86 = sbr.rel (0) target = $region61
    $region60: #{critic_forward.1} parent=1 // pred_region
      %87 = dma.done [#allocation7], 16
    $region61: #{critic_forward.1} parent=1 // pred_fallthru
      _
    // Predicated region
    $region62: #{critic_forward.1} parent=1 // pred_check
      _
    $region63: #{critic_forward.1} parent=1 // pred_check_branch
      %89 = sbr.rel (0) target = $region65
    $region64: #{critic_forward.1} parent=1 // pred_region
      %90 = dma.done [#allocation7], 16
    $region65: #{critic_forward.1} parent=1 // pred_fallthru
      _
    // Predicated region
    $region66: #{critic_forward.1} parent=1 // pred_check
      _
    $region67: #{critic_forward.1} parent=1 // pred_check_branch
      %92 = sbr.rel (0) target = $region69
    $region68: #{critic_forward.1} parent=1 // pred_region
      %93 = dma.done [#allocation10], 16
    $region69: #{critic_forward.1} parent=1 // pred_fallthru
      _
    %v94 = vld [vmem:[%s0] sm:$0xff]
    %v95 = vld [vmem:[%s1] sm:$0xff]
    %v96 = vld [vmem:[%s2] sm:$0xff]
    %v97 = vld [vmem:[%s2 + $0x8] sm:$0xff]
    %v98 = vld [vmem:[%s3] sm:$0x1]
    %v100 = vlaneseq
    %v101 = vshrl.u32 %v100, 7
    %v102 = vsub.s32 0, %v101
    %v103 = vrot.slane %v98, %v102
    %vm105 = vcmask 130048
    %v107 = vsel %vm105, %v94, 0
    %109 = vmatprep.subr.mxu0 0.0
    %110 = vmatpush1.msra.mxu0 %v96
    %111 = vmatprep.subr.mxu0 0.0
    %112 = vmatpush1.msra.mxu0 %v97
    %113 = vmatprep.subr.mxu0 0.0
    %114 = vmatpush1.msra.mxu0 0.0
    %115 = vmatprep.subr.mxu0 0.0
    %116 = vmatpush1.msra.mxu0 0.0
    %117 = vmatprep.subr.mxu0 0.0
    %118 = vmatpush1.msra.mxu0 0.0
    %119 = vmatprep.subr.mxu0 0.0
    %120 = vmatpush1.msra.mxu0 0.0
    %121 = vmatprep.subr.mxu0 0.0
    %122 = vmatpush1.msra.mxu0 0.0
    %123 = vmatprep.subr.mxu0 0.0
    %124 = vmatpush1.msra.mxu0 0.0
    %125 = vmatprep.subr.mxu0 0.0
    %126 = vmatpush1.msra.mxu0 0.0
    %127 = vmatprep.subr.mxu0 0.0
    %128 = vmatpush1.msra.mxu0 0.0
    %129 = vmatprep.subr.mxu0 0.0
    %130 = vmatpush1.msra.mxu0 0.0
    %131 = vmatprep.subr.mxu0 0.0
    %132 = vmatpush1.msra.mxu0 0.0
    %133 = vmatprep.subr.mxu0 0.0
    %134 = vmatpush1.msra.mxu0 0.0
    %135 = vmatprep.subr.mxu0 0.0
    %136 = vmatpush1.msra.mxu0 0.0
    %137 = vmatprep.subr.mxu0 0.0
    %138 = vmatpush1.msra.mxu0 0.0
    %139 = vmatprep.subr.mxu0 0.0
    %140 = vmatpush1.msra.mxu0 0.0
    %141 = vmatprep.subr.mxu0 0.0
    %142 = vmatpush1.msra.mxu0 0.0
    %143 = vmatprep.subr.mxu0 0.0
    %144 = vmatpush1.msra.mxu0 0.0
    %145 = vmatprep.subr.mxu0 0.0
    %146 = vmatpush1.msra.mxu0 0.0
    %147 = vmatprep.subr.mxu0 0.0
    %148 = vmatpush1.msra.mxu0 0.0
    %149 = vmatprep.subr.mxu0 0.0
    %150 = vmatpush1.msra.mxu0 0.0
    %151 = vmatprep.subr.mxu0 0.0
    %152 = vmatpush1.msra.mxu0 0.0
    %153 = vmatprep.subr.mxu0 0.0
    %154 = vmatpush1.msra.mxu0 0.0
    %155 = vmatprep.subr.mxu0 0.0
    %156 = vmatpush1.msra.mxu0 0.0
    %157 = vmatprep.subr.mxu0 0.0
    %158 = vmatpush1.msra.mxu0 0.0
    %159 = vmatprep.subr.mxu0 0.0
    %160 = vmatpush1.msra.mxu0 0.0
    %161 = vmatprep.subr.mxu0 0.0
    %162 = vmatpush1.msra.mxu0 0.0
    %163 = vmatprep.subr.mxu0 0.0
    %164 = vmatpush1.msra.mxu0 0.0
    %165 = vmatprep.subr.mxu0 0.0
    %166 = vmatpush1.msra.mxu0 0.0
    %167 = vmatprep.subr.mxu0 0.0
    %168 = vmatpush1.msra.mxu0 0.0
    %169 = vmatprep.subr.mxu0 0.0
    %170 = vmatpush1.msra.mxu0 0.0
    %171 = vmatprep.subr.mxu0 0.0
    %172 = vmatpush1.msra.mxu0 0.0
    %173 = vmatprep.mubr.f32.mxu0 0.0
    %174 = vmatmul.mubr.f32.gmra.mrb[0].mxu0 %v107
    %v175 = vpop.f32.mrb[0].mxu0
    %v176 = vadd.f32 %v103, %v175
    %v177 = vpop.f32.mrb[0].mxu0
    %178 = vdwg.mxu0
    %v179 = vld [vmem:[%s4] sm:$0x1]
    %v180 = vld [vmem:[#allocation3] sm:$0x1]
    %vm181 = vcmask 261120
    %v182 = vsel %vm181, %v176, 0.0
    %183 = vadd.xlane.f32.xlu0 %v182
    %v184 = vpop.xlane.xlu0 %183
    %v185 = vmul.f32 %v176, %v176
    %v186 = vsel %vm181, %v185, 0.0
    %187 = vadd.xlane.f32.xlu0 %v186
    %v188 = vpop.xlane.xlu0 %187
    %v189 = vmul.f32 %v184, 0.03125
    %v190 = vmul.f32 %v188, 0.03125
    %v191 = vmul.f32 %v189, %v189
    %v192 = vsub.f32 %v190, %v191
    %v193 = vmax.f32 %v192, 0.0
    %v194 = vsub.f32 %v176, %v189
    %v195 = vadd.f32 %v193, 1e-05
    %v196 = vrsqrt.pop %v195
    %v197 = vmul.f32 %v194, %v196
    %v199 = vlaneseq
    %v200 = vshrl.u32 %v199, 7
    %v201 = vsub.s32 0, %v200
    %v202 = vrot.slane %v179, %v201
    %v204 = vmul.f32 %v197, %v202
    %v206 = vlaneseq
    %v207 = vshrl.u32 %v206, 7
    %v208 = vsub.s32 0, %v207
    %v209 = vrot.slane %v180, %v208
    %v211 = vadd.f32 %v204, %v209
    %v212 = vmax.f32 %v211, 0.0
    %v213 = vld [vmem:[%s6] sm:$0xff]
    %v214 = vld [vmem:[%s6 + $0x8] sm:$0xff]
    %v215 = vld [vmem:[%s6 + $0x10] sm:$0xff]
    %v216 = vld [vmem:[%s6 + $0x18] sm:$0xff]
    %v217 = vld [vmem:[%s7] sm:$0xf]
    %vm218 = vcmask 31744
    %v220 = vsel %vm218, %v95, 0
    %vm222 = vcmask 1043456
    %v224 = vsel %vm222, %v217, 0
    %226 = vmatprep.subr.mxu0 0.0
    %227 = vmatpush1.msra.mxu0 %v224
    %228 = vmatprep.subr.mxu0 0.0
    %229 = vmatpush1.msra.mxu0 0.0
    %230 = vmatprep.subr.mxu0 0.0
    %231 = vmatpush1.msra.mxu0 0.0
    %232 = vmatprep.subr.mxu0 0.0
    %233 = vmatpush1.msra.mxu0 0.0
    %234 = vmatprep.subr.mxu0 0.0
    %235 = vmatpush1.msra.mxu0 0.0
    %236 = vmatprep.subr.mxu0 0.0
    %237 = vmatpush1.msra.mxu0 0.0
    %238 = vmatprep.subr.mxu0 0.0
    %239 = vmatpush1.msra.mxu0 0.0
    %240 = vmatprep.subr.mxu0 0.0
    %241 = vmatpush1.msra.mxu0 0.0
    %242 = vmatprep.subr.mxu0 0.0
    %243 = vmatpush1.msra.mxu0 0.0
    %244 = vmatprep.subr.mxu0 0.0
    %245 = vmatpush1.msra.mxu0 0.0
    %246 = vmatprep.subr.mxu0 0.0
    %247 = vmatpush1.msra.mxu0 0.0
    %248 = vmatprep.subr.mxu0 0.0
    %249 = vmatpush1.msra.mxu0 0.0
    %250 = vmatprep.subr.mxu0 0.0
    %251 = vmatpush1.msra.mxu0 0.0
    %252 = vmatprep.subr.mxu0 0.0
    %253 = vmatpush1.msra.mxu0 0.0
    %254 = vmatprep.subr.mxu0 0.0
    %255 = vmatpush1.msra.mxu0 0.0
    %256 = vmatprep.subr.mxu0 0.0
    %257 = vmatpush1.msra.mxu0 0.0
    %258 = vmatprep.subr.mxu0 0.0
    %259 = vmatpush1.msra.mxu0 0.0
    %260 = vmatprep.subr.mxu0 0.0
    %261 = vmatpush1.msra.mxu0 0.0
    %262 = vmatprep.subr.mxu0 0.0
    %263 = vmatpush1.msra.mxu0 0.0
    %264 = vmatprep.subr.mxu0 0.0
    %265 = vmatpush1.msra.mxu0 0.0
    %266 = vmatprep.subr.mxu0 0.0
    %267 = vmatpush1.msra.mxu0 0.0
    %268 = vmatprep.subr.mxu0 0.0
    %269 = vmatpush1.msra.mxu0 0.0
    %270 = vmatprep.subr.mxu0 0.0
    %271 = vmatpush1.msra.mxu0 0.0
    %272 = vmatprep.subr.mxu0 0.0
    %273 = vmatpush1.msra.mxu0 0.0
    %274 = vmatprep.subr.mxu0 0.0
    %275 = vmatpush1.msra.mxu0 0.0
    %276 = vmatprep.subr.mxu0 0.0
    %277 = vmatpush1.msra.mxu0 0.0
    %278 = vmatprep.subr.mxu0 0.0
    %279 = vmatpush1.msra.mxu0 0.0
    %280 = vmatprep.subr.mxu0 0.0
    %281 = vmatpush1.msra.mxu0 0.0
    %282 = vmatprep.subr.mxu0 0.0
    %283 = vmatpush1.msra.mxu0 0.0
    %284 = vmatprep.subr.mxu0 0.0
    %285 = vmatpush1.msra.mxu0 0.0
    %286 = vmatprep.subr.mxu0 0.0
    %287 = vmatpush1.msra.mxu0 0.0
    %288 = vmatprep.subr.mxu0 0.0
    %289 = vmatpush1.msra.mxu0 0.0
    %290 = vmatprep.mubr.f32.mxu0 0.0
    %291 = vmatmul.mubr.f32.gmra.mrb[0].mxu0 %v220
    %v292 = vpop.f32.mrb[0].mxu0
    %v293 = vadd.f32 0.0, %v292
    %v294 = vpop.f32.mrb[0].mxu0
    %295 = vdwg.mxu0
    %v297 = vsel %vm181, %v212, 0
    %299 = vmatprep.subr.mxu0 0.0
    %300 = vmatpush1.msra.mxu0 %v213
    %301 = vmatprep.subr.mxu0 0.0
    %302 = vmatpush1.msra.mxu0 %v214
    %303 = vmatprep.subr.mxu0 0.0
    %304 = vmatpush1.msra.mxu0 %v215
    %305 = vmatprep.subr.mxu0 0.0
    %306 = vmatpush1.msra.mxu0 %v216
    %307 = vmatprep.subr.mxu0 0.0
    %308 = vmatpush1.msra.mxu0 0.0
    %309 = vmatprep.subr.mxu0 0.0
    %310 = vmatpush1.msra.mxu0 0.0
    %311 = vmatprep.subr.mxu0 0.0
    %312 = vmatpush1.msra.mxu0 0.0
    %313 = vmatprep.subr.mxu0 0.0
    %314 = vmatpush1.msra.mxu0 0.0
    %315 = vmatprep.subr.mxu0 0.0
    %316 = vmatpush1.msra.mxu0 0.0
    %317 = vmatprep.subr.mxu0 0.0
    %318 = vmatpush1.msra.mxu0 0.0
    %319 = vmatprep.subr.mxu0 0.0
    %320 = vmatpush1.msra.mxu0 0.0
    %321 = vmatprep.subr.mxu0 0.0
    %322 = vmatpush1.msra.mxu0 0.0
    %323 = vmatprep.subr.mxu0 0.0
    %324 = vmatpush1.msra.mxu0 0.0
    %325 = vmatprep.subr.mxu0 0.0
    %326 = vmatpush1.msra.mxu0 0.0
    %327 = vmatprep.subr.mxu0 0.0
    %328 = vmatpush1.msra.mxu0 0.0
    %329 = vmatprep.subr.mxu0 0.0
    %330 = vmatpush1.msra.mxu0 0.0
    %331 = vmatprep.subr.mxu0 0.0
    %332 = vmatpush1.msra.mxu0 0.0
    %333 = vmatprep.subr.mxu0 0.0
    %334 = vmatpush1.msra.mxu0 0.0
    %335 = vmatprep.subr.mxu0 0.0
    %336 = vmatpush1.msra.mxu0 0.0
    %337 = vmatprep.subr.mxu0 0.0
    %338 = vmatpush1.msra.mxu0 0.0
    %339 = vmatprep.subr.mxu0 0.0
    %340 = vmatpush1.msra.mxu0 0.0
    %341 = vmatprep.subr.mxu0 0.0
    %342 = vmatpush1.msra.mxu0 0.0
    %343 = vmatprep.subr.mxu0 0.0
    %344 = vmatpush1.msra.mxu0 0.0
    %345 = vmatprep.subr.mxu0 0.0
    %346 = vmatpush1.msra.mxu0 0.0
    %347 = vmatprep.subr.mxu0 0.0
    %348 = vmatpush1.msra.mxu0 0.0
    %349 = vmatprep.subr.mxu0 0.0
    %350 = vmatpush1.msra.mxu0 0.0
    %351 = vmatprep.subr.mxu0 0.0
    %352 = vmatpush1.msra.mxu0 0.0
    %353 = vmatprep.subr.mxu0 0.0
    %354 = vmatpush1.msra.mxu0 0.0
    %355 = vmatprep.subr.mxu0 0.0
    %356 = vmatpush1.msra.mxu0 0.0
    %357 = vmatprep.subr.mxu0 0.0
    %358 = vmatpush1.msra.mxu0 0.0
    %359 = vmatprep.subr.mxu0 0.0
    %360 = vmatpush1.msra.mxu0 0.0
    %361 = vmatprep.subr.mxu0 0.0
    %362 = vmatpush1.msra.mxu0 0.0
    %363 = vmatprep.mubr.f32.mxu0 0.0
    %364 = vmatmul.mubr.f32.gmra.mrb[0].mxu0 %v297
    %v365 = vpop.f32.mrb[0].mxu0
    %v366 = vadd.f32 %v293, %v365
    %v367 = vpop.f32.mrb[0].mxu0
    %368 = vdwg.mxu0
    %v369 = vld [vmem:[#allocation6] sm:$0x1]
    %v371 = vlaneseq
    %v372 = vshrl.u32 %v371, 7
    %v373 = vsub.s32 0, %v372
    %v374 = vrot.slane %v369, %v373
    %v376 = vadd.f32 %v366, %v374
    %v377 = vld [vmem:[#allocation8] sm:$0x1]
    %v378 = vld [vmem:[#allocation9] sm:$0x1]
    %v379 = vsel %vm181, %v376, 0.0
    %380 = vadd.xlane.f32.xlu0 %v379
    %v381 = vpop.xlane.xlu0 %380
    %v382 = vmul.f32 %v376, %v376
    %v383 = vsel %vm181, %v382, 0.0
    %384 = vadd.xlane.f32.xlu0 %v383
    %v385 = vpop.xlane.xlu0 %384
    %v386 = vmul.f32 %v381, 0.03125
    %v387 = vmul.f32 %v385, 0.03125
    %v388 = vmul.f32 %v386, %v386
    %v389 = vsub.f32 %v387, %v388
    %v390 = vmax.f32 %v389, 0.0
    %v391 = vsub.f32 %v376, %v386
    %v392 = vadd.f32 %v390, 1e-05
    %v393 = vrsqrt.pop %v392
    %v394 = vmul.f32 %v391, %v393
    %v396 = vlaneseq
    %v397 = vshrl.u32 %v396, 7
    %v398 = vsub.s32 0, %v397
    %v399 = vrot.slane %v377, %v398
    %v401 = vmul.f32 %v394, %v399
    %v403 = vlaneseq
    %v404 = vshrl.u32 %v403, 7
    %v405 = vsub.s32 0, %v404
    %v406 = vrot.slane %v378, %v405
    %v408 = vadd.f32 %v401, %v406
    %v409 = vmax.f32 %v408, 0.0
    %v410 = vld [vmem:[%s11] sm:$0xff]
    %v412 = vsel %vm181, %v410, 0
    %v415 = vsel %vm181, %v409, 0
    %417 = vmatprep.subr.mxu0 0.0
    %418 = vmatpush1.xpose.msra.mxu0 %v415
    %419 = vmatprep.subr.mxu0 0.0
    %420 = vmatpush1.xpose.msra.mxu0 0.0
    %421 = vmatprep.subr.mxu0 0.0
    %422 = vmatpush1.xpose.msra.mxu0 0.0
    %423 = vmatprep.subr.mxu0 0.0
    %424 = vmatpush1.xpose.msra.mxu0 0.0
    %425 = vmatprep.subr.mxu0 0.0
    %426 = vmatpush1.xpose.msra.mxu0 0.0
    %427 = vmatprep.subr.mxu0 0.0
    %428 = vmatpush1.xpose.msra.mxu0 0.0
    %429 = vmatprep.subr.mxu0 0.0
    %430 = vmatpush1.xpose.msra.mxu0 0.0
    %431 = vmatprep.subr.mxu0 0.0
    %432 = vmatpush1.xpose.msra.mxu0 0.0
    %433 = vmatprep.subr.mxu0 0.0
    %434 = vmatpush1.xpose.msra.mxu0 0.0
    %435 = vmatprep.subr.mxu0 0.0
    %436 = vmatpush1.xpose.msra.mxu0 0.0
    %437 = vmatprep.subr.mxu0 0.0
    %438 = vmatpush1.xpose.msra.mxu0 0.0
    %439 = vmatprep.subr.mxu0 0.0
    %440 = vmatpush1.xpose.msra.mxu0 0.0
    %441 = vmatprep.subr.mxu0 0.0
    %442 = vmatpush1.xpose.msra.mxu0 0.0
    %443 = vmatprep.subr.mxu0 0.0
    %444 = vmatpush1.xpose.msra.mxu0 0.0
    %445 = vmatprep.subr.mxu0 0.0
    %446 = vmatpush1.xpose.msra.mxu0 0.0
    %447 = vmatprep.subr.mxu0 0.0
    %448 = vmatpush1.xpose.msra.mxu0 0.0
    %449 = vmatprep.subr.mxu0 0.0
    %450 = vmatpush1.xpose.msra.mxu0 0.0
    %451 = vmatprep.subr.mxu0 0.0
    %452 = vmatpush1.xpose.msra.mxu0 0.0
    %453 = vmatprep.subr.mxu0 0.0
    %454 = vmatpush1.xpose.msra.mxu0 0.0
    %455 = vmatprep.subr.mxu0 0.0
    %456 = vmatpush1.xpose.msra.mxu0 0.0
    %457 = vmatprep.subr.mxu0 0.0
    %458 = vmatpush1.xpose.msra.mxu0 0.0
    %459 = vmatprep.subr.mxu0 0.0
    %460 = vmatpush1.xpose.msra.mxu0 0.0
    %461 = vmatprep.subr.mxu0 0.0
    %462 = vmatpush1.xpose.msra.mxu0 0.0
    %463 = vmatprep.subr.mxu0 0.0
    %464 = vmatpush1.xpose.msra.mxu0 0.0
    %465 = vmatprep.subr.mxu0 0.0
    %466 = vmatpush1.xpose.msra.mxu0 0.0
    %467 = vmatprep.subr.mxu0 0.0
    %468 = vmatpush1.xpose.msra.mxu0 0.0
    %469 = vmatprep.subr.mxu0 0.0
    %470 = vmatpush1.xpose.msra.mxu0 0.0
    %471 = vmatprep.subr.mxu0 0.0
    %472 = vmatpush1.xpose.msra.mxu0 0.0
    %473 = vmatprep.subr.mxu0 0.0
    %474 = vmatpush1.xpose.msra.mxu0 0.0
    %475 = vmatprep.subr.mxu0 0.0
    %476 = vmatpush1.xpose.msra.mxu0 0.0
    %477 = vmatprep.subr.mxu0 0.0
    %478 = vmatpush1.xpose.msra.mxu0 0.0
    %479 = vmatprep.subr.mxu0 0.0
    %480 = vmatpush1.xpose.msra.mxu0 0.0
    %481 = vmatprep.mubr.f32.mxu0 0.0
    %482 = vmatmul.mubr.f32.gmra.mrb[0].mxu0 %v412
    %v483 = vpop.f32.mrb[0].mxu0
    %v484 = vadd.f32 0.0, %v483
    %v485 = vpop.f32.mrb[0].mxu0
    %486 = vdwg.mxu0
    %v487 = vld [vmem:[#allocation2] sm:$0x1]
    %489 = vset.pattern.permute.xlu0 0
    %490 = vperm.xlu0 %489, %v487
    %v491 = vpop.permute.xlu0 %490
    %v493 = vlaneseq
    %v494 = vshrl.u32 %v493, 7
    %v495 = vsub.s32 0, %v494
    %v496 = vrot.slane %v491, %v495
    %v497 = vadd.f32 %v484, %v496
    %vm498 = vcmask 57344
    %499 = vst.msk [vmem:[#allocation11] sm:$0x1] %vm498, %v497
    // Predicated region
    $region70: #{critic_forward.1} parent=1 // pred_check
      _
    $region71: #{critic_forward.1} parent=1 // pred_check_branch
      %501 = sbr.rel (0) target = $region73
    $region72: #{critic_forward.1} parent=1 // pred_region
      %s503 = ssub.s32 16, 16
      %504 = vsyncadd [#allocation5], %s503
      %s506 = sshll.u32 [#allocation11], 4
      %s507 = int_to_ptr.vmem [resolvable:$true] %s506
      %509 = dma.vmem_to_hbm [thread:$0]  %s507, 16, %s13, [#allocation5]
    $region73: #{critic_forward.1} parent=1 // pred_fallthru
      _
    // Predicated region
    $region74: #{critic_forward.1} parent=1 // pred_check
      _
    $region75: #{critic_forward.1} parent=1 // pred_check_branch
      %511 = sbr.rel (0) target = $region77
    $region76: #{critic_forward.1} parent=1 // pred_region
      %512 = dma.done [#allocation5], 16
    $region77: #{critic_forward.1} parent=1 // pred_fallthru
      _
    %513 = vsyncpa [#allocation4], 1
    %514 = vsyncpa [#allocation7], 1
    %515 = vsyncpa [#allocation10], 1
    %516 = vsyncpa [#allocation5], 1

</llo_original>
